<compile_context>
chip_gen: v7x
topology: tpu7x:2x2x1
jax: 0.10.0
libtpu: 0.0.40
codegen_flags: <defaults>
</compile_context>

<pallas_src>
import functools

import jax
import jax.numpy as jnp
from jax import lax
from jax.experimental import pallas as pl
from jax.experimental.pallas import tpu as pltpu

_LANES = 128
_SUBLANES = 8
_TARGET_BLOCK_BYTES = 2 * 1024 * 1024   # ~2 MiB physical VMEM per input block


def _focal_loss_kernel(*refs, alpha, gamma, with_mask, s_blk, hw, mask_tail):
    """One (batch, spatial-block) step: focal loss, masked sum into SMEM accumulator."""
    if with_mask:
        pred_ref, tgt_ref, vis_ref, out_ref, acc_ref = refs
    else:
        pred_ref, tgt_ref, out_ref, acc_ref = refs
        vis_ref = None

    s = pl.program_id(1)
    ns = pl.num_programs(1)

    @pl.when(s == 0)
    def _():
        acc_ref[0] = 0.0

    x = pred_ref[...].astype(jnp.float32)   # (1, C, s_blk)
    t = tgt_ref[...].astype(jnp.float32)

    w = None
    if mask_tail:
        # Ragged spatial tail: zero out the garbage overhang before any transcendental.
        col = lax.broadcasted_iota(jnp.int32, x.shape, 2)
        valid = (s * s_blk + col) < hw
        x = jnp.where(valid, x, 0.0)
        t = jnp.where(valid, t, 0.0)
        if with_mask:
            v = vis_ref[...].astype(jnp.float32)          # (1, 1, s_blk)
            w = jnp.where(valid, v, 0.0)                  # broadcast over C
        else:
            w = valid.astype(jnp.float32)
    elif with_mask:
        w = vis_ref[...].astype(jnp.float32)              # (1, 1, s_blk), broadcasts

    # --- sigmoid focal loss (torchvision semantics, reduction='none') ---
    p = jax.nn.sigmoid(x)
    # BCE-with-logits: max(x,0) - x*t + log1p(exp(-|x|)); reuse p since
    # log1p(exp(-|x|)) == -log(sigmoid(|x|))  -> saves one exp per element.
    sig_abs = jnp.where(x >= 0.0, p, 1.0 - p)
    ce = jnp.maximum(x, 0.0) - x * t - jnp.log(sig_abs)
    p_t = p * t + (1.0 - p) * (1.0 - t)
    one_minus = 1.0 - p_t
    if float(gamma) == 2.0:                 # default path: no pow -> no exp/log pair
        focal = one_minus * one_minus
    else:
        focal = jnp.power(one_minus, gamma)
    loss = ce * focal
    if alpha >= 0:
        loss = (alpha * t + (1.0 - alpha) * (1.0 - t)) * loss

    if w is not None:
        loss = loss * w

    acc_ref[0] += jnp.sum(loss)

    @pl.when(s == ns - 1)
    def _():
        # Lane-dense (1, 8, 128) store; JAX side reads element [0, 0].
        out_ref[...] = jnp.full(out_ref.shape, acc_ref[0], jnp.float32)


def binary_segmentation_loss(pred_dict, batch, *, key='bev', min_visibility=0,
                             alpha=-1.0, gamma=2.0, eps=1e-6):
    """JAX/Pallas equivalent of BinarySegmentationLoss.forward."""
    pred = pred_dict[key]
    target = batch[key]
    assert pred.shape == target.shape
    B, C, H, W = pred.shape
    HW = H * W

    pred3 = pred.reshape(B, C, HW)        # free (contiguous) reshapes
    tgt3 = target.reshape(B, C, HW)

    with_mask = min_visibility > 0
    if with_mask:
        vis = batch[f'{key}_visibility']                                   # (B, H, W)
        vis_mask = (vis >= min_visibility).astype(jnp.float32).reshape(B, 1, HW)

    # Spatial block size: ~2 MiB of *physical* VMEM per input block, accounting for
    # sublane padding when C < 8.  Multiple of 128 lanes unless it covers all of HW.
    sub = max(_SUBLANES, ((C + _SUBLANES - 1) // _SUBLANES) * _SUBLANES)
    s_max = max(_LANES, (_TARGET_BLOCK_BYTES // (sub * 4)) // _LANES * _LANES)
    if HW <= s_max:
        s_blk, ns, mask_tail = HW, 1, False
    else:
        s_blk = s_max
        ns = (HW + s_blk - 1) // s_blk
        mask_tail = (HW % s_blk) != 0

    kern = functools.partial(_focal_loss_kernel, alpha=float(alpha),
                             gamma=float(gamma), with_mask=with_mask,
                             s_blk=s_blk, hw=HW, mask_tail=mask_tail)

    in_specs = [pl.BlockSpec((1, C, s_blk), lambda b, s: (b, 0, s)),
                pl.BlockSpec((1, C, s_blk), lambda b, s: (b, 0, s))]
    inputs = [pred3, tgt3]
    if with_mask:
        in_specs.append(pl.BlockSpec((1, 1, s_blk), lambda b, s: (b, 0, s)))
        inputs.append(vis_mask)

    part = pl.pallas_call(
        kern,
        out_shape=jax.ShapeDtypeStruct((B, _SUBLANES, _LANES), jnp.float32),
        grid_spec=pltpu.PrefetchScalarGridSpec(
            num_scalar_prefetch=0,
            grid=(B, ns),
            in_specs=in_specs,
            out_specs=pl.BlockSpec((1, _SUBLANES, _LANES), lambda b, s: (b, 0, 0)),
            scratch_shapes=[pltpu.SMEM((1,), jnp.float32)]),
        compiler_params=pltpu.CompilerParams(
            dimension_semantics=("parallel", "arbitrary")),
    )(*inputs)

    loss_sum = part[:, 0, 0].sum()
    if with_mask:
        denom = C * jnp.sum(vis_mask)      # mask.sum() == C * count(vis >= min_vis)
    else:
        denom = jnp.float32(B * C * HW)    # mask.sum() == numel
    return loss_sum / (denom + eps)


def _reference_loss(pred, target, mask, alpha, gamma, eps):
    """Pure-JAX reference mirroring the PyTorch module (torchvision formulation)."""
    pred = pred.astype(jnp.float32)
    target = target.astype(jnp.float32)
    p = jax.nn.sigmoid(pred)
    ce = jnp.maximum(pred, 0.0) - pred * target + jnp.log1p(jnp.exp(-jnp.abs(pred)))
    p_t = p * target + (1.0 - p) * (1.0 - target)
    loss = ce * jnp.power(1.0 - p_t, gamma)
    if alpha >= 0:
        loss = (alpha * target + (1.0 - alpha) * (1.0 - target)) * loss
    return (loss * mask).sum() / (mask.sum() + eps)


if __name__ == "__main__":
    B, C, H, W = 2, 4, 16, 16
    key = jax.random.PRNGKey(0)
    k1, k2, k3 = jax.random.split(key, 3)

    pred = jax.random.normal(k1, (B, C, H, W), dtype=jnp.float32)
    target = jax.random.bernoulli(k2, 0.3, (B, C, H, W)).astype(jnp.float32)
    visibility = jax.random.randint(k3, (B, H, W), 0, 4).astype(jnp.int32)

    pred_dict = {'bev': pred}
    batch = {'bev': target, 'bev_visibility': visibility}

    # Case 1: default module config (min_visibility=0, alpha=-1, gamma=2)
    out0 = jax.block_until_ready(
        binary_segmentation_loss(pred_dict, batch, min_visibility=0))
    ref0 = _reference_loss(pred, target, jnp.ones_like(pred), -1.0, 2.0, 1e-6)
    assert jnp.allclose(out0, ref0, rtol=3e-5, atol=1e-6), (out0, ref0)

    # Case 2: visibility masking path (min_visibility=1)
    out1 = jax.block_until_ready(
        binary_segmentation_loss(pred_dict, batch, min_visibility=1))
    vis_mask = (visibility >= 1).astype(jnp.float32)[:, None]
    mask1 = jnp.broadcast_to(vis_mask, pred.shape)
    ref1 = _reference_loss(pred, target, mask1, -1.0, 2.0, 1e-6)
    assert jnp.allclose(out1, ref1, rtol=3e-5, atol=1e-6), (out1, ref1)

    print("KERNEL_OK")
</pallas_src>

<mosaic_0001>
module attributes {stable_mosaic.version = 11 : i64} {
  func.func @_focal_loss_kernel(%arg0: i32, %arg1: i32, %arg2: memref<1x4x256xf32, #tpu.memory_space<vmem>>, %arg3: memref<1x4x256xf32, #tpu.memory_space<vmem>>, %arg4: memref<1x8x128xf32, #tpu.memory_space<vmem>>, %arg5: memref<1xf32, #tpu.memory_space<smem>>) attributes {dimension_semantics = [#tpu.dimension_semantics<parallel>, #tpu.dimension_semantics<arbitrary>], iteration_bounds = array<i64: 2, 1>, scalar_prefetch = 0 : i64, scratch_operands = 1 : i64, tpu.core_type = #tpu.core_type<tc>, window_params = [{transform_indices = @transform_0, window_bounds = array<i64: 1, 4, 256>}, {transform_indices = @transform_1, window_bounds = array<i64: 1, 4, 256>}, {transform_indices = @transform_2, window_bounds = array<i64: 1, 8, 128>}]} {
    %c0_i32 = arith.constant 0 : i32
    %0 = arith.cmpi eq, %arg1, %c0_i32 : i32
    %1 = arith.extui %0 : i1 to i32
    %c0_i32_0 = arith.constant 0 : i32
    %2 = arith.cmpi ne, %1, %c0_i32_0 : i32
    scf.if %2 {
      %cst_17 = arith.constant 0.000000e+00 : f32
      %c0_18 = arith.constant 0 : index
      %42 = memref.load %arg5[%c0_18] : memref<1xf32, #tpu.memory_space<smem>>
      memref.store %cst_17, %arg5[%c0_18] : memref<1xf32, #tpu.memory_space<smem>>
    } else {
    }
    %c0 = arith.constant 0 : index
    %c0_1 = arith.constant 0 : index
    %c0_2 = arith.constant 0 : index
    %3 = vector.load %arg2[%c0, %c0_1, %c0_2] : memref<1x4x256xf32, #tpu.memory_space<vmem>>, vector<1x4x256xf32>
    %c0_3 = arith.constant 0 : index
    %c0_4 = arith.constant 0 : index
    %c0_5 = arith.constant 0 : index
    %4 = vector.load %arg3[%c0_3, %c0_4, %c0_5] : memref<1x4x256xf32, #tpu.memory_space<vmem>>, vector<1x4x256xf32>
    %5 = arith.negf %3 : vector<1x4x256xf32>
    %6 = math.exp %5 : vector<1x4x256xf32>
    %cst = arith.constant 1.000000e+00 : f32
    %7 = vector.broadcast %cst : f32 to vector<1x4x256xf32>
    %8 = arith.addf %7, %6 : vector<1x4x256xf32>
    %9 = arith.divf %7, %8 : vector<1x4x256xf32>
    %cst_6 = arith.constant 0.000000e+00 : f32
    %10 = vector.broadcast %cst_6 : f32 to vector<1x4x256xf32>
    %11 = arith.cmpf oge, %3, %10 : vector<1x4x256xf32>
    %cst_7 = arith.constant 1.000000e+00 : f32
    %12 = vector.broadcast %cst_7 : f32 to vector<1x4x256xf32>
    %13 = arith.subf %12, %9 : vector<1x4x256xf32>
    %14 = arith.select %11, %9, %13 : vector<1x4x256xi1>, vector<1x4x256xf32>
    %cst_8 = arith.constant 0.000000e+00 : f32
    %15 = vector.broadcast %cst_8 : f32 to vector<1x4x256xf32>
    %16 = arith.maximumf %3, %15 : vector<1x4x256xf32>
    %17 = arith.mulf %3, %4 : vector<1x4x256xf32>
    %18 = arith.subf %16, %17 : vector<1x4x256xf32>
    %19 = math.log %14 : vector<1x4x256xf32>
    %20 = arith.subf %18, %19 : vector<1x4x256xf32>
    %21 = arith.mulf %9, %4 : vector<1x4x256xf32>
    %cst_9 = arith.constant 1.000000e+00 : f32
    %22 = vector.broadcast %cst_9 : f32 to vector<1x4x256xf32>
    %23 = arith.subf %22, %9 : vector<1x4x256xf32>
    %cst_10 = arith.constant 1.000000e+00 : f32
    %24 = vector.broadcast %cst_10 : f32 to vector<1x4x256xf32>
    %25 = arith.subf %24, %4 : vector<1x4x256xf32>
    %26 = arith.mulf %23, %25 : vector<1x4x256xf32>
    %27 = arith.addf %21, %26 : vector<1x4x256xf32>
    %cst_11 = arith.constant 1.000000e+00 : f32
    %28 = vector.broadcast %cst_11 : f32 to vector<1x4x256xf32>
    %29 = arith.subf %28, %27 : vector<1x4x256xf32>
    %30 = arith.mulf %29, %29 : vector<1x4x256xf32>
    %31 = arith.mulf %20, %30 : vector<1x4x256xf32>
    %c0_12 = arith.constant 0 : index
    %32 = memref.load %arg5[%c0_12] : memref<1xf32, #tpu.memory_space<smem>>
    %33 = vector.shape_cast %31 : vector<1x4x256xf32> to vector<1x1x4x256xf32>
    %cst_13 = arith.constant dense<0.000000e+00> : vector<1xf32>
    %34 = vector.multi_reduction <add>, %33, %cst_13 [1, 2, 3] : vector<1x1x4x256xf32> to vector<1xf32>
    %35 = vector.shape_cast %34 : vector<1xf32> to vector<1x1x1x1xf32>
    %36 = vector.extract %35[0, 0, 0, 0] : f32 from vector<1x1x1x1xf32>
    %37 = arith.addf %32, %36 : f32
    %c0_14 = arith.constant 0 : index
    %38 = memref.load %arg5[%c0_14] : memref<1xf32, #tpu.memory_space<smem>>
    memref.store %37, %arg5[%c0_14] : memref<1xf32, #tpu.memory_space<smem>>
    %c0_i32_15 = arith.constant 0 : i32
    %39 = arith.cmpi eq, %arg1, %c0_i32_15 : i32
    %40 = arith.extui %39 : i1 to i32
    %c0_i32_16 = arith.constant 0 : i32
    %41 = arith.cmpi ne, %40, %c0_i32_16 : i32
    scf.if %41 {
      %c0_17 = arith.constant 0 : index
      %42 = memref.load %arg5[%c0_17] : memref<1xf32, #tpu.memory_space<smem>>
      %43 = vector.broadcast %42 : f32 to vector<1x8x128xf32>
      %c0_18 = arith.constant 0 : index
      %c0_19 = arith.constant 0 : index
      %c0_20 = arith.constant 0 : index
      %44 = vector.load %arg4[%c0_18, %c0_19, %c0_20] : memref<1x8x128xf32, #tpu.memory_space<vmem>>, vector<1x8x128xf32>
      tpu.vector_store %arg4[%c0_18, %c0_19, %c0_20], %43 {strides = array<i32>} : memref<1x8x128xf32, #tpu.memory_space<vmem>>, vector<1x8x128xf32>,
    } else {
    }
    return
  }
  func.func @transform_0(%arg0: i32, %arg1: i32) -> (i32, i32, i32) {
    %c0_i32 = arith.constant 0 : i32
    %c0_i32_0 = arith.constant 0 : i32
    return %arg0, %c0_i32, %arg1 : i32, i32, i32
  }
  func.func @transform_1(%arg0: i32, %arg1: i32) -> (i32, i32, i32) {
    %c0_i32 = arith.constant 0 : i32
    %c0_i32_0 = arith.constant 0 : i32
    return %arg0, %c0_i32, %arg1 : i32, i32, i32
  }
  func.func @transform_2(%arg0: i32, %arg1: i32) -> (i32, i32, i32) {
    %c0_i32 = arith.constant 0 : i32
    %c0_i32_0 = arith.constant 0 : i32
    %c0_i32_1 = arith.constant 0 : i32
    return %arg0, %c0_i32, %c0_i32_0 : i32, i32, i32
  }
}

</mosaic_0001>

<llo_original>
// kernel: tpu_custom_call.1
$region0: #{tpu_custom_call.1}
  #allocation0 [shape = 'u32[]', space=smem, size = 0x4, offset = 0x4, fixed_abs, tag = 'smem constant byte address 0x4 - core index']
  #allocation1 [shape = 'u32[144,128]{1,0:T(1,128)}', space=vmem, size = 0x12000, scoped, tag = 'internal scratch']
  #allocation2 [shape = 'f32[1]{0:T(128)}', space=smem, size = 0x200, scoped, tag = 'scratch operand']
  %s0 = inlined_call_operand.hbm [shape: f32[2,4,256], index: 0, kind: input, shape index: {}]
  %s1 = inlined_call_operand.hbm [shape: f32[2,4,256], index: 1, kind: input, shape index: {}]
  %s2 = inlined_call_operand.hbm [shape: f32[2,8,128], index: 2, kind: output, shape index: {}]
  %s3 = sld [smem:[#allocation0]]
  $region57: #{tpu_custom_call.1} parent=0
    _
  %s5 = ssub.s32 1, %s3
  %s6 = scalar_select 0, %s5, %s3
  $region1: #{tpu_custom_call.1} parent=0
    #allocation3 [shape = 'u8[8192]{0}', space=vmem, size = 0x2000, scoped, tag = 'input window, operand 0']
    #allocation4 [shape = 's32[2]{0}', space=sflag, size = 0x8, scoped, tag = 'scoped memory for tpu_custom_call.1']
    #allocation5 [shape = 's32[2]{0}', space=sflag, size = 0x8, scoped, tag = 'scoped memory for tpu_custom_call.1']
    #allocation6 [shape = 'u8[8192]{0}', space=vmem, size = 0x2000, scoped, tag = 'input window, operand 1']
    #allocation7 [shape = 's32[2]{0}', space=sflag, size = 0x8, scoped, tag = 'scoped memory for tpu_custom_call.1']
    #allocation8 [shape = 'u8[8192]{0}', space=vmem, size = 0x2000, scoped, tag = 'output window, operand 0']
    %7 = vsyncpa [#allocation4], 0
    %s8 = scalar_lea.sflag [#allocation4], 1
    %9 = vsyncpa %s8, 0
    %10 = vsyncpa [#allocation7], 0
    %s11 = scalar_lea.sflag [#allocation7], 1
    %12 = vsyncpa %s11, 0
    %13 = vsyncpa [#allocation5], 0
    %s14 = scalar_lea.sflag [#allocation5], 1
    %15 = vsyncpa %s14, 0
    loop: start=0, step=1, limit=4
    $region2: #{tpu_custom_call.1} parent=1 // loop_pre_header
      _
    $region3: #{tpu_custom_call.1} parent=1 // loop_header
      %s17 = sphi 0, %s21
      %p18 = scmp.ge.s32.totalorder %s17, 4
      %s24 = sphi 0, %s36
      %s25 = sphi 0, %s32
      %s26 = sphi 0, %s24
      %s27 = sphi 0, %s25
      %s28 = sphi 0, %s26
      %s29 = sphi 0, %s27
      %s41 = sphi 0, %s43
      %s44 = sphi 0, %s41
      %s45 = sphi 0, %s44
      %s61 = sphi 0, %s45
      %s69 = sphi 0, %s71
      %s72 = sphi 0, %s69
      %s73 = sphi 0, %s72
      %s89 = sphi 0, %s73
      %s95 = sphi 0, %s97
      %s98 = sphi 0, %s95
      %s99 = sphi 0, %s98
      %s115 = sphi 0, %s99
    $region4: #{tpu_custom_call.1} parent=1 // loop_header_branch
      %20 = sbr.rel (%p18) target = $region8
    $region5: #{tpu_custom_call.1} parent=1 // loop_body
      %s22 = ssub.s32 %s17, 1
      %s23 = ssub.s32 %s17, 2
      %s30 = sadd.s32 1, %s25
      %p31 = scmp.ge.s32.totalorder %s30, 1
      %s32 = scalar_select %p31, 0, %s30
      %s33 = sadd.s32 1, %s24
      %s34 = scalar_select %p31, %s33, %s24
      %p35 = scmp.ge.s32.totalorder %s34, 2
      %s36 = scalar_select %p35, 0, %s34
      %s37 = ssub.s32 %s24, %s36
      %s38 = ssub.s32 %s25, %s32
      %s39 = sor.u32 %s37, %s38
      %p40 = scmp.eq.s32.totalorder %s39, 0
      %s42 = sadd.s32 %s41, 1
      %s43 = scalar_select %p40, %s41, %s42
      %p46 = pneg %p40
      %p47 = scmp.eq.s32.totalorder %s17, 1
      %p48 = por %p46, %p47
      %p49 = scmp.ne.s32.totalorder %s41, %s44
      %p50 = scmp.eq.s32.totalorder %s17, 0
      %p51 = por %p49, %p50
      %p52 = scmp.ne.s32.totalorder %s41, %s44
      %p53 = scmp.eq.s32.totalorder %s22, 1
      %p54 = por %p52, %p53
      %p55 = scmp.ne.s32.totalorder %s44, %s45
      %p56 = scmp.eq.s32.totalorder %s22, 0
      %p57 = por %p55, %p56
      %p58 = scmp.ne.s32.totalorder %s44, %s45
      %p59 = scmp.eq.s32.totalorder %s23, 1
      %p60 = por %p58, %p59
      %p62 = scmp.ne.s32.totalorder %s45, %s61
      %p63 = scmp.eq.s32.totalorder %s23, 0
      %p64 = por %p62, %p63
      %s65 = ssub.s32 %s24, %s36
      %s66 = ssub.s32 %s25, %s32
      %s67 = sor.u32 %s65, %s66
      %p68 = scmp.eq.s32.totalorder %s67, 0
      %s70 = sadd.s32 %s69, 1
      %s71 = scalar_select %p68, %s69, %s70
      %p74 = pneg %p68
      %p75 = scmp.eq.s32.totalorder %s17, 1
      %p76 = por %p74, %p75
      %p77 = scmp.ne.s32.totalorder %s69, %s72
      %p78 = scmp.eq.s32.totalorder %s17, 0
      %p79 = por %p77, %p78
      %p80 = scmp.ne.s32.totalorder %s69, %s72
      %p81 = scmp.eq.s32.totalorder %s22, 1
      %p82 = por %p80, %p81
      %p83 = scmp.ne.s32.totalorder %s72, %s73
      %p84 = scmp.eq.s32.totalorder %s22, 0
      %p85 = por %p83, %p84
      %p86 = scmp.ne.s32.totalorder %s72, %s73
      %p87 = scmp.eq.s32.totalorder %s23, 1
      %p88 = por %p86, %p87
      %p90 = scmp.ne.s32.totalorder %s73, %s89
      %p91 = scmp.eq.s32.totalorder %s23, 0
      %p92 = por %p90, %p91
      %s93 = ssub.s32 %s24, %s36
      %p94 = scmp.eq.s32.totalorder %s93, 0
      %s96 = sadd.s32 %s95, 1
      %s97 = scalar_select %p94, %s95, %s96
      %p100 = pneg %p94
      %p101 = scmp.eq.s32.totalorder %s17, 1
      %p102 = por %p100, %p101
      %p103 = scmp.ne.s32.totalorder %s95, %s98
      %p104 = scmp.eq.s32.totalorder %s17, 0
      %p105 = por %p103, %p104
      %p106 = scmp.ne.s32.totalorder %s95, %s98
      %p107 = scmp.eq.s32.totalorder %s22, 1
      %p108 = por %p106, %p107
      %p109 = scmp.ne.s32.totalorder %s98, %s99
      %p110 = scmp.eq.s32.totalorder %s22, 0
      %p111 = por %p109, %p110
      %p112 = scmp.ne.s32.totalorder %s98, %s99
      %p113 = scmp.eq.s32.totalorder %s23, 1
      %p114 = por %p112, %p113
      %p116 = scmp.ne.s32.totalorder %s99, %s115
      %p117 = scmp.eq.s32.totalorder %s23, 0
      %p118 = por %p116, %p117
      %p119 = scmp.le.s32.totalorder 1, %s17
      %p120 = scmp.lt.s32.totalorder %s17, 3
      %p121 = pnand %p119, %p120
      %p122 = pneg %p121
      // Predicated region
      $region9: #{tpu_custom_call.1} parent=5 // pred_check
        _
      $region10: #{tpu_custom_call.1} parent=5 // pred_check_branch
        %124 = sbr.rel (%p121) target = $region12
      $region11: #{tpu_custom_call.1} parent=5 // pred_region
        %s125 = ssub.s32 %s17, 1
      $region12: #{tpu_custom_call.1} parent=5 // pred_fallthru
        _
      %p126 = scmp.lt.s32.totalorder %s17, 2
      // Predicated region
      $region13: #{tpu_custom_call.1} parent=5 // pred_check
        %p127 = pneg %p126
      $region14: #{tpu_custom_call.1} parent=5 // pred_check_branch
        %129 = sbr.rel (%p127) target = $region16
      $region15: #{tpu_custom_call.1} parent=5 // pred_region
        // Predicated region
        $region17: #{tpu_custom_call.1} parent=15 // pred_check
          %p130 = pneg %p51
        $region18: #{tpu_custom_call.1} parent=15 // pred_check_branch
          %132 = sbr.rel (%p130) target = $region20
        $region19: #{tpu_custom_call.1} parent=15 // pred_region
          %s133 = sand.u32 %s41, 1
          %s134 = scalar_lea.sflag [#allocation4], %s133
          %s135 = sand.u32 %s41, 1
          %s136 = smul.addr %s135, 8
          %s137 = scalar_lea.vmem [#allocation3], %s136
          %s138 = smul.u32 2, %s25
          %s140 = ssub.s32 128, 128
          %141 = vsyncadd %s134, %s140
          %s142 = smul.addr %s24, 2
          %s143 = sadd.s32 %s138, %s142
          %s144 = smul.addr %s143, 64
          %s145 = scalar_lea.hbm %s0, %s144
          %s147 = sshll.u32 %s137, 4
          %s148 = int_to_ptr.vmem [resolvable:$true] %s147
          %150 = dma.hbm_to_vmem [thread:$0]  %s145, 128, %s148, %s134
        $region20: #{tpu_custom_call.1} parent=15 // pred_fallthru
          _
        // Predicated region
        $region21: #{tpu_custom_call.1} parent=15 // pred_check
          %p151 = pneg %p79
        $region22: #{tpu_custom_call.1} parent=15 // pred_check_branch
          %153 = sbr.rel (%p151) target = $region24
        $region23: #{tpu_custom_call.1} parent=15 // pred_region
          %s154 = sand.u32 %s69, 1
          %s155 = scalar_lea.sflag [#allocation7], %s154
          %s156 = sand.u32 %s69, 1
          %s157 = smul.addr %s156, 8
          %s158 = scalar_lea.vmem [#allocation6], %s157
          %s159 = smul.u32 2, %s25
          %s161 = ssub.s32 128, 128
          %162 = vsyncadd %s155, %s161
          %s163 = smul.addr %s24, 2
          %s164 = sadd.s32 %s159, %s163
          %s165 = smul.addr %s164, 64
          %s166 = scalar_lea.hbm %s1, %s165
          %s168 = sshll.u32 %s158, 4
          %s169 = int_to_ptr.vmem [resolvable:$true] %s168
          %171 = dma.hbm_to_vmem [thread:$0]  %s166, 128, %s169, %s155
        $region24: #{tpu_custom_call.1} parent=15 // pred_fallthru
          _
      $region16: #{tpu_custom_call.1} parent=5 // pred_fallthru
        _
      %p172 = scmp.le.s32.totalorder 1, %s17
      %p173 = scmp.lt.s32.totalorder %s17, 3
      %p174 = pnand %p172, %p173
      %p175 = pneg %p174
      // Predicated region
      $region25: #{tpu_custom_call.1} parent=5 // pred_check
        _
      $region26: #{tpu_custom_call.1} parent=5 // pred_check_branch
        %177 = sbr.rel (%p174) target = $region28
      $region27: #{tpu_custom_call.1} parent=5 // pred_region
        %s178 = ssub.s32 %s17, 1
        %s179 = sand.u32 %s44, 1
        %s180 = scalar_lea.sflag [#allocation4], %s179
        %s181 = sand.u32 %s44, 1
        %s182 = smul.addr %s181, 8
        %s183 = scalar_lea.vmem [#allocation3], %s182
        // Predicated region
        $region29: #{tpu_custom_call.1} parent=27 // pred_check
          %p184 = pneg %p57
        $region30: #{tpu_custom_call.1} parent=27 // pred_check_branch
          %186 = sbr.rel (%p184) target = $region32
        $region31: #{tpu_custom_call.1} parent=27 // pred_region
          %187 = dma.done %s180, 128
        $region32: #{tpu_custom_call.1} parent=27 // pred_fallthru
          _
        %s188 = sand.u32 %s72, 1
        %s189 = scalar_lea.sflag [#allocation7], %s188
        %s190 = sand.u32 %s72, 1
        %s191 = smul.addr %s190, 8
        %s192 = scalar_lea.vmem [#allocation6], %s191
        // Predicated region
        $region33: #{tpu_custom_call.1} parent=27 // pred_check
          %p193 = pneg %p85
        $region34: #{tpu_custom_call.1} parent=27 // pred_check_branch
          %195 = sbr.rel (%p193) target = $region36
        $region35: #{tpu_custom_call.1} parent=27 // pred_region
          %196 = dma.done %s189, 128
        $region36: #{tpu_custom_call.1} parent=27 // pred_fallthru
          _
        %s197 = sand.u32 %s44, 1
        %s198 = scalar_lea.sflag [#allocation4], %s197
        %s199 = sand.u32 %s44, 1
        %s200 = smul.addr %s199, 8
        %s201 = scalar_lea.vmem [#allocation3], %s200
        %p202 = pneg %p57
        %p203 = pneg %p54
        %s204 = sand.u32 %s72, 1
        %s205 = scalar_lea.sflag [#allocation7], %s204
        %s206 = sand.u32 %s72, 1
        %s207 = smul.addr %s206, 8
        %s208 = scalar_lea.vmem [#allocation6], %s207
        %p209 = pneg %p85
        %p210 = pneg %p82
        %p211 = pneg %p111
        %p212 = pneg %p108
        %s213 = sand.u32 %s98, 1
        %s214 = scalar_lea.sflag [#allocation5], %s213
        %s215 = sand.u32 %s98, 1
        %s216 = smul.addr %s215, 8
        %s217 = scalar_lea.vmem [#allocation8], %s216
        %s218 = smul.u32 2, %s27
        %s219 = smul.u32 2, %s27
        %p220 = scmp.eq.s32.totalorder %s27, 0
        // Predicated region
        $region37: #{tpu_custom_call.1} parent=27 // pred_check
          %p221 = pneg %p220
        $region38: #{tpu_custom_call.1} parent=27 // pred_check_branch
          %223 = sbr.rel (%p221) target = $region40
        $region39: #{tpu_custom_call.1} parent=27 // pred_region
          %s224 = scalar_lea.smem [#allocation2], 0
          %225 = sst [smem:[%s224]] 0.0
        $region40: #{tpu_custom_call.1} parent=27 // pred_fallthru
          _
        %v226 = vld [vmem:[%s183] sm:$0xff]
        %v227 = vld [vmem:[%s192] sm:$0xff]
        %v228 = vxor.u32 %v226, 2147483648
        %v229 = vmul.f32 %v228, 1.442695
        %v230 = vpow.pop %v229
        %v231 = vadd.f32 %v230, 1.0
        %v232 = vrcp.pop %v231
        %v233 = vmul.f32 1.0, %v232
        %vm234 = vcmp.ge.f32.partialorder %v226, 0.0
        %v235 = vsub.f32 1.0, %v233
        %v236 = vsel %vm234, %v233, %v235
        %v237 = vmax.f32 %v226, 0.0
        %v238 = vmul.f32 %v226, %v227
        %v239 = vsub.f32 %v237, %v238
        %v240 = vlog2.pop %v236
        %v241 = vmul.f32 %v240, 0.6931472
        %v242 = vsub.f32 %v239, %v241
        %v243 = vmul.f32 %v233, %v227
        %v244 = vsub.f32 1.0, %v227
        %v245 = vmul.f32 %v235, %v244
        %v246 = vadd.f32 %v243, %v245
        %v247 = vsub.f32 1.0, %v246
        %v248 = vmul.f32 %v247, %v247
        %v249 = vmul.f32 %v242, %v248
        %s250 = sld [smem:[#allocation2]]
        %v252 = vcombine.high %v249, %v249
        %vm254 = vcmask 1043456
        %v255 = vsel %vm254, %v249, 0.0
        %v256 = vsel %vm254, %v252, 0.0
        %v257 = vadd.f32 %v255, %v256
        %258 = vadd.xlane.f32.xlu0 %v257
        %v259 = vpop.xlane.xlu0 %258
        %v260 = vrot.slane %v259, 4
        %v261 = vadd.f32 %v259, %v260
        %v262 = vrot.slane %v261, 2
        %v263 = vadd.f32 %v261, %v262
        %v264 = vrot.slane %v263, 1
        %v265 = vadd.f32 %v263, %v264
        %s266 = vtos %v265
        %s267 = sadd.f32 %s250, %s266
        %s268 = scalar_lea.smem [#allocation2], 0
        %269 = sst [smem:[%s268]] %s267
        // Predicated region
        $region41: #{tpu_custom_call.1} parent=27 // pred_check
          %p270 = pneg %p220
        $region42: #{tpu_custom_call.1} parent=27 // pred_check_branch
          %272 = sbr.rel (%p270) target = $region44
        $region43: #{tpu_custom_call.1} parent=27 // pred_region
          %s273 = sld [smem:[#allocation2]]
          %v274 = vstv %s273
          %275 = vst [vmem:[%s217] sm:$0xff] %v274
        $region44: #{tpu_custom_call.1} parent=27 // pred_fallthru
          _
        %s276 = sand.u32 %s98, 1
        %s277 = scalar_lea.sflag [#allocation5], %s276
        %s278 = sand.u32 %s98, 1
        %s279 = smul.addr %s278, 8
        %s280 = scalar_lea.vmem [#allocation8], %s279
        // Predicated region
        $region45: #{tpu_custom_call.1} parent=27 // pred_check
          %p281 = pneg %p108
        $region46: #{tpu_custom_call.1} parent=27 // pred_check_branch
          %283 = sbr.rel (%p281) target = $region48
        $region47: #{tpu_custom_call.1} parent=27 // pred_region
          %s285 = ssub.s32 128, 128
          %286 = vsyncadd %s277, %s285
          %s287 = smul.addr %s26, 128
          %s288 = scalar_lea.hbm %s2, %s287
          %s290 = sshll.u32 %s280, 4
          %s291 = int_to_ptr.vmem [resolvable:$true] %s290
          %293 = dma.vmem_to_hbm [thread:$0]  %s291, 128, %s288, %s277
        $region48: #{tpu_custom_call.1} parent=27 // pred_fallthru
          _
      $region28: #{tpu_custom_call.1} parent=5 // pred_fallthru
        _
      %p294 = scmp.le.s32.totalorder 2, %s17
      // Predicated region
      $region49: #{tpu_custom_call.1} parent=5 // pred_check
        %p295 = pneg %p294
      $region50: #{tpu_custom_call.1} parent=5 // pred_check_branch
        %297 = sbr.rel (%p295) target = $region52
      $region51: #{tpu_custom_call.1} parent=5 // pred_region
        %s298 = ssub.s32 %s17, 2
        // Predicated region
        $region53: #{tpu_custom_call.1} parent=51 // pred_check
          %p299 = pneg %p114
        $region54: #{tpu_custom_call.1} parent=51 // pred_check_branch
          %301 = sbr.rel (%p299) target = $region56
        $region55: #{tpu_custom_call.1} parent=51 // pred_region
          %s302 = sand.u32 %s99, 1
          %s303 = scalar_lea.sflag [#allocation5], %s302
          %s304 = sand.u32 %s99, 1
          %s305 = smul.addr %s304, 8
          %s306 = scalar_lea.vmem [#allocation8], %s305
          %307 = dma.done %s303, 128
        $region56: #{tpu_custom_call.1} parent=51 // pred_fallthru
          _
      $region52: #{tpu_custom_call.1} parent=5 // pred_fallthru
        _
    $region6: #{tpu_custom_call.1} parent=1 // loop_footer
      %s21 = sadd.s32 1, %s17
    $region7: #{tpu_custom_call.1} parent=1 // loop_footer_branch
      %16 = sbr.rel target = $region3
    $region8: #{tpu_custom_call.1} parent=1 // loop_exit
      _
    %308 = vsyncpa [#allocation4], 1
    %s309 = scalar_lea.sflag [#allocation4], 1
    %310 = vsyncpa %s309, 1
    %311 = vsyncpa [#allocation7], 1
    %s312 = scalar_lea.sflag [#allocation7], 1
    %313 = vsyncpa %s312, 1
    %314 = vsyncpa [#allocation5], 1
    %s315 = scalar_lea.sflag [#allocation5], 1
    %316 = vsyncpa %s315, 1

</llo_original>
